<compile_context>
chip_gen: v6e
topology: v6e:2x2x1
jax: 0.10.0
libtpu: 0.0.40
codegen_flags: <defaults>
</compile_context>

<pallas_src>
import jax
import jax.numpy as jnp
from jax.experimental import pallas as pl
from jax.experimental.pallas import tpu as pltpu

LANE = 128  # lane width (last-dim granularity)


def _cdiv(a, b):
    return (a + b - 1) // b


def _round_up(x, m):
    return (x + m - 1) // m * m


def _sublane(dtype):
    # minimum sublane granularity by element size (f32: 8, bf16: 16, int8/fp8: 32)
    return {4: 8, 2: 16, 1: 32}.get(jnp.dtype(dtype).itemsize, 8)


def _device_kind():
    try:
        return jax.devices()[0].device_kind.lower()
    except Exception:
        return ""


_IS_V7X = "v7" in _device_kind()
_S_TILE_CAP = 4096 if _IS_V7X else 2048          # lanes per spatial tile
_R_TILE_CAP = 256                                # rows per tile
_VMEM_LIMIT = (48 << 20) if _IS_V7X else None    # explicit scoped-VMEM limit on v7x
_FUSED_SLAB_MAX = 2 << 20                        # per-block byte budget, fused path


# ---------------------------------------------------------------------------
# Fused single-pass kernel: pool + gate + multiply over (n_per, C, S) blocks.
# ---------------------------------------------------------------------------
def _make_fused_kernel(inv_s):
    def kernel(w1t_ref, b1_ref, w2t_ref, b2_ref, x_ref, o_ref):
        x = x_ref[...]                                               # (n, C, S)
        pooled = jnp.sum(x.astype(jnp.float32), axis=2) * inv_s      # (n, C)
        # Tiny SE bottleneck "matmuls" as broadcast-multiply-reduce (VPU):
        # shapes are too small/ragged to be worth MXU lowering.
        h = jnp.maximum(
            jnp.sum(pooled[:, :, None] * w1t_ref[...][None, :, :], axis=1)
            + b1_ref[...], 0.0)                                      # (n, btn)
        z = (jnp.sum(h[:, :, None] * w2t_ref[...][None, :, :], axis=1)
             + b2_ref[...])                                          # (n, C)
        g = 1.0 / (1.0 + jnp.exp(-z))                                # sigmoid
        o_ref[...] = (x * g[:, :, None].astype(x.dtype)).astype(o_ref.dtype)
    return kernel


# ---------------------------------------------------------------------------
# Pass 1 (two-pass path): per-row spatial mean, lane-parallel accumulation.
# grid = (n_row_tiles, n_spatial_tiles); spatial axis last ("arbitrary").
# ---------------------------------------------------------------------------
def _make_pool_kernel(r_tile, s_tile, S, inv_s):
    need_mask = (S % s_tile) != 0
    n_groups = s_tile // LANE

    def kernel(x_ref, mean_ref, acc_ref):
        s_idx = pl.program_id(1)

        @pl.when(s_idx == 0)
        def _():
            acc_ref[...] = jnp.zeros_like(acc_ref)

        base = s_idx * s_tile
        part = jnp.zeros((r_tile, LANE), jnp.float32)
        for j in range(n_groups):                      # static unrolled loop
            blk = x_ref[:, j * LANE:(j + 1) * LANE].astype(jnp.float32)
            if need_mask:
                lane = jax.lax.broadcasted_iota(jnp.int32, (r_tile, LANE), 1)
                blk = jnp.where(base + j * LANE + lane < S, blk, 0.0)
            part = part + blk
        acc_ref[...] += part

        @pl.when(s_idx == pl.num_programs(1) - 1)
        def _():
            mean_ref[...] = jnp.sum(acc_ref[...], axis=1, keepdims=True) * inv_s

    return kernel


def _make_pool_kernel_simple(inv_s):
    # Single full-width spatial block (S not a multiple of 128, S < tile cap).
    def kernel(x_ref, mean_ref):
        mean_ref[...] = jnp.sum(
            x_ref[...].astype(jnp.float32), axis=1, keepdims=True) * inv_s
    return kernel


# ---------------------------------------------------------------------------
# Pass 2 (two-pass path): channel-wise gate multiply in x's dtype.
# ---------------------------------------------------------------------------
def _gate_mul_kernel(g_ref, x_ref, o_ref):
    o_ref[...] = (x_ref[...] * g_ref[...]).astype(o_ref.dtype)


@jax.jit
def se3d_forward(x, w1, s1, b1, w2, s2, b2):
    N, C, T, H, W = x.shape
    S = T * H * W
    btn = w1.shape[0]
    C_out = w2.shape[0]
    assert C_out == C, "SE gate must broadcast-multiply onto x (out == in channels)"

    itemsize = jnp.dtype(x.dtype).itemsize
    inv_s = 1.0 / float(S)

    # Fold BN scales into the 1x1x1 conv weights (eval-mode BN).
    w1f = (w1 * s1).astype(jnp.float32)          # (btn, C)
    w2f = (w2 * s2).astype(jnp.float32)          # (C, btn)
    b1v = b1.reshape(-1).astype(jnp.float32)     # (btn,)
    b2v = b2.reshape(-1).astype(jnp.float32)     # (C,)

    slab_bytes = C * S * itemsize

    # ---------------- fused single-pass path ----------------
    if slab_bytes <= _FUSED_SLAB_MAX:
        x3 = x.reshape(N, C, S)
        n_per = max(1, min(N, _FUSED_SLAB_MAX // slab_bytes))
        grid_n = _cdiv(N, n_per)
        out3 = pl.pallas_call(
            _make_fused_kernel(inv_s),
            out_shape=jax.ShapeDtypeStruct((N, C, S), x.dtype),
            grid_spec=pltpu.PrefetchScalarGridSpec(
                num_scalar_prefetch=0,
                grid=(grid_n,),
                in_specs=[
                    pl.BlockSpec((C, btn), lambda n: (0, 0)),          # w1f.T
                    pl.BlockSpec((1, btn), lambda n: (0, 0)),          # b1
                    pl.BlockSpec((btn, C), lambda n: (0, 0)),          # w2f.T
                    pl.BlockSpec((1, C), lambda n: (0, 0)),            # b2
                    pl.BlockSpec((n_per, C, S), lambda n: (n, 0, 0)),  # x
                ],
                out_specs=pl.BlockSpec((n_per, C, S), lambda n: (n, 0, 0)),
            ),
            compiler_params=pltpu.CompilerParams(
                dimension_semantics=("parallel",),
                vmem_limit_bytes=_VMEM_LIMIT),
            cost_estimate=pl.CostEstimate(
                flops=2 * N * C * S + 4 * N * C * btn,
                transcendentals=N * C,
                bytes_accessed=2 * N * C * S * itemsize),
        )(w1f.T, b1v.reshape(1, btn), w2f.T, b2v.reshape(1, C), x3)
        return out3.reshape(N, C, T, H, W)

    # ---------------- two-pass path ----------------
    R = N * C
    x2 = x.reshape(R, S)                         # metadata reshape only

    sub = _sublane(x.dtype)
    if R > _R_TILE_CAP:
        r_tile = _R_TILE_CAP
    elif R >= 2 * sub:
        # give the megacore at least two row blocks
        r_tile = _round_up(_cdiv(R, 2), sub)
    else:
        r_tile = R                               # single full-dim row block
    n_r = _cdiv(R, r_tile)

    s_tile = _S_TILE_CAP if S >= _S_TILE_CAP else S
    n_s = _cdiv(S, s_tile)
    lane_parallel = (s_tile % LANE == 0)

    # ---- pass 1: per-(n, c) spatial mean -----------------------------------
    pool_cost = pl.CostEstimate(
        flops=R * S, transcendentals=0,
        bytes_accessed=R * S * itemsize + R * 4)
    if lane_parallel:
        pooled_mean = pl.pallas_call(
            _make_pool_kernel(r_tile, s_tile, S, inv_s),
            out_shape=jax.ShapeDtypeStruct((R, 1), jnp.float32),
            grid_spec=pltpu.PrefetchScalarGridSpec(
                num_scalar_prefetch=0,
                grid=(n_r, n_s),
                in_specs=[pl.BlockSpec((r_tile, s_tile), lambda r, s: (r, s))],
                out_specs=pl.BlockSpec((r_tile, 1), lambda r, s: (r, 0)),
                scratch_shapes=[pltpu.VMEM((r_tile, LANE), jnp.float32)]),
            compiler_params=pltpu.CompilerParams(
                dimension_semantics=("parallel", "arbitrary"),
                vmem_limit_bytes=_VMEM_LIMIT),
            cost_estimate=pool_cost,
        )(x2)
    else:
        pooled_mean = pl.pallas_call(
            _make_pool_kernel_simple(inv_s),
            out_shape=jax.ShapeDtypeStruct((R, 1), jnp.float32),
            grid_spec=pltpu.PrefetchScalarGridSpec(
                num_scalar_prefetch=0,
                grid=(n_r,),
                in_specs=[pl.BlockSpec((r_tile, S), lambda r: (r, 0))],
                out_specs=pl.BlockSpec((r_tile, 1), lambda r: (r, 0))),
            compiler_params=pltpu.CompilerParams(
                dimension_semantics=("parallel",),
                vmem_limit_bytes=_VMEM_LIMIT),
            cost_estimate=pool_cost,
        )(x2)

    # ---- gate: batched over N, tiny matmuls done in plain XLA --------------
    pooled = pooled_mean.reshape(N, C)                       # f32 means
    h = jnp.maximum(pooled @ w1f.T + b1v, 0.0)               # (N, btn)
    g = jax.nn.sigmoid(h @ w2f.T + b2v)                      # (N, C)
    g_col = g.reshape(R, 1).astype(x.dtype)

    # ---- pass 2: tiled element-wise gate multiply ---------------------------
    out2 = pl.pallas_call(
        _gate_mul_kernel,
        out_shape=jax.ShapeDtypeStruct((R, S), x.dtype),
        grid_spec=pltpu.PrefetchScalarGridSpec(
            num_scalar_prefetch=0,
            grid=(n_r, n_s),
            in_specs=[
                pl.BlockSpec((r_tile, 1), lambda r, s: (r, 0)),       # gate
                pl.BlockSpec((r_tile, s_tile), lambda r, s: (r, s)),  # x
            ],
            out_specs=pl.BlockSpec((r_tile, s_tile), lambda r, s: (r, s)),
        ),
        compiler_params=pltpu.CompilerParams(
            dimension_semantics=("parallel", "parallel"),
            vmem_limit_bytes=_VMEM_LIMIT),
        cost_estimate=pl.CostEstimate(
            flops=R * S, transcendentals=0,
            bytes_accessed=2 * R * S * itemsize + R * itemsize),
    )(g_col, x2)

    return out2.reshape(N, C, T, H, W)


def make_bn_scale_shift(gamma, beta, running_mean, running_var, eps=1e-5):
    scale = gamma / jnp.sqrt(running_var + eps)
    shift = beta - running_mean * scale
    return scale[:, None], shift[:, None]


def se3d_reference(x, w1, s1, b1, w2, s2, b2):
    # pure-JAX reference for sanity checking
    pooled = jnp.mean(x, axis=(2, 3, 4))                      # (N, C)
    h = pooled @ w1.T                                         # (N, btn)
    h = jnp.maximum(h * s1[:, 0] + b1[:, 0], 0.0)
    g = h @ w2.T                                              # (N, C)
    g = jax.nn.sigmoid(g * s2[:, 0] + b2[:, 0])
    return g[:, :, None, None, None] * x


def _make_se3d_params(key, in_channels, out_channels, se_ratio=0.25):
    # SE3D: btn = max(1, round(in * se_ratio) // 8) * 8 ; 1x1x1 convs, bias=False; BN folded.
    btn = max(1, round(in_channels * se_ratio) // 8) * 8
    k = jax.random.split(key, 10)
    w1 = 0.5 * jax.random.normal(k[0], (btn, in_channels), dtype=jnp.float32)
    w2 = 0.5 * jax.random.normal(k[1], (out_channels, btn), dtype=jnp.float32)
    g1 = 1.0 + 0.1 * jax.random.normal(k[2], (btn,), dtype=jnp.float32)
    be1 = 0.1 * jax.random.normal(k[3], (btn,), dtype=jnp.float32)
    rm1 = 0.1 * jax.random.normal(k[4], (btn,), dtype=jnp.float32)
    rv1 = jnp.abs(1.0 + 0.1 * jax.random.normal(k[5], (btn,), dtype=jnp.float32))
    g2 = 1.0 + 0.1 * jax.random.normal(k[6], (out_channels,), dtype=jnp.float32)
    be2 = 0.1 * jax.random.normal(k[7], (out_channels,), dtype=jnp.float32)
    rm2 = 0.1 * jax.random.normal(k[8], (out_channels,), dtype=jnp.float32)
    rv2 = jnp.abs(1.0 + 0.1 * jax.random.normal(k[9], (out_channels,), dtype=jnp.float32))
    s1, b1 = make_bn_scale_shift(g1, be1, rm1, rv1)
    s2, b2 = make_bn_scale_shift(g2, be2, rm2, rv2)
    return w1, s1, b1, w2, s2, b2


if __name__ == "__main__":
    key = jax.random.PRNGKey(0)
    kx1, kp1, kx2, kp2 = jax.random.split(key, 4)

    # Case 1: small slab -> fused single-pass kernel.
    N, C, T, H, W = 2, 4, 4, 8, 8
    x = jax.random.normal(kx1, (N, C, T, H, W), dtype=jnp.float32)
    params = _make_se3d_params(kp1, C, C)
    out = jax.block_until_ready(se3d_forward(x, *params))
    ref = se3d_reference(x, *params)
    assert out.shape == x.shape
    assert jnp.allclose(out, ref, atol=1e-4, rtol=1e-4)

    # Case 2: larger slab with a ragged spatial tail (S = 72000, not a multiple
    # of 128 or 2048) -> two-pass tiled path with in-kernel tail masking.
    N, C, T, H, W = 2, 16, 5, 120, 120
    x = jax.random.normal(kx2, (N, C, T, H, W), dtype=jnp.float32)
    params = _make_se3d_params(kp2, C, C)
    out = jax.block_until_ready(se3d_forward(x, *params))
    ref = se3d_reference(x, *params)
    assert out.shape == x.shape
    assert jnp.allclose(out, ref, atol=1e-4, rtol=1e-4)

    print("KERNEL_OK")
</pallas_src>

<mosaic_0001>
module attributes {stable_mosaic.version = 11 : i64} {
  func.func @kernel(%arg0: i32, %arg1: memref<4x8xf32, #tpu.memory_space<vmem>>, %arg2: memref<1x8xf32, #tpu.memory_space<vmem>>, %arg3: memref<8x4xf32, #tpu.memory_space<vmem>>, %arg4: memref<1x4xf32, #tpu.memory_space<vmem>>, %arg5: memref<2x4x256xf32, #tpu.memory_space<vmem>>, %arg6: memref<2x4x256xf32, #tpu.memory_space<vmem>>) attributes {dimension_semantics = [#tpu.dimension_semantics<parallel>], iteration_bounds = array<i64: 1>, scalar_prefetch = 0 : i64, scratch_operands = 0 : i64, tpu.core_type = #tpu.core_type<tc>, window_params = [{pipeline_mode = #tpu.pipeline_mode<synchronous>, transform_indices = @transform_0, window_bounds = array<i64: 4, 8>}, {pipeline_mode = #tpu.pipeline_mode<synchronous>, transform_indices = @transform_1, window_bounds = array<i64: 1, 8>}, {pipeline_mode = #tpu.pipeline_mode<synchronous>, transform_indices = @transform_2, window_bounds = array<i64: 8, 4>}, {pipeline_mode = #tpu.pipeline_mode<synchronous>, transform_indices = @transform_3, window_bounds = array<i64: 1, 4>}, {transform_indices = @transform_4, window_bounds = array<i64: 2, 4, 256>}, {transform_indices = @transform_5, window_bounds = array<i64: 2, 4, 256>}]} {
    %c0 = arith.constant 0 : index
    %c0_0 = arith.constant 0 : index
    %c0_1 = arith.constant 0 : index
    %0 = vector.load %arg5[%c0, %c0_0, %c0_1] : memref<2x4x256xf32, #tpu.memory_space<vmem>>, vector<2x4x256xf32>
    %cst = arith.constant dense<0.000000e+00> : vector<2x4xf32>
    %1 = vector.multi_reduction <add>, %0, %cst [2] : vector<2x4x256xf32> to vector<2x4xf32>
    %cst_2 = arith.constant 3.906250e-03 : f32
    %2 = vector.broadcast %cst_2 : f32 to vector<2x4xf32>
    %3 = arith.mulf %1, %2 : vector<2x4xf32>
    %4 = vector.shape_cast %3 : vector<2x4xf32> to vector<2x4x1xf32>
    %c0_3 = arith.constant 0 : index
    %c0_4 = arith.constant 0 : index
    %5 = vector.load %arg1[%c0_3, %c0_4] : memref<4x8xf32, #tpu.memory_space<vmem>>, vector<4x8xf32>
    %6 = vector.shape_cast %5 : vector<4x8xf32> to vector<1x4x8xf32>
    %7 = vector.broadcast %4 : vector<2x4x1xf32> to vector<2x4x8xf32>
    %8 = vector.broadcast %6 : vector<1x4x8xf32> to vector<2x4x8xf32>
    %9 = arith.mulf %7, %8 : vector<2x4x8xf32>
    %cst_5 = arith.constant dense<0.000000e+00> : vector<2x8xf32>
    %10 = vector.multi_reduction <add>, %9, %cst_5 [1] : vector<2x4x8xf32> to vector<2x8xf32>
    %c0_6 = arith.constant 0 : index
    %c0_7 = arith.constant 0 : index
    %11 = vector.load %arg2[%c0_6, %c0_7] : memref<1x8xf32, #tpu.memory_space<vmem>>, vector<1x8xf32>
    %12 = vector.broadcast %11 : vector<1x8xf32> to vector<2x8xf32>
    %13 = arith.addf %10, %12 : vector<2x8xf32>
    %cst_8 = arith.constant 0.000000e+00 : f32
    %14 = vector.broadcast %cst_8 : f32 to vector<2x8xf32>
    %15 = arith.maximumf %13, %14 : vector<2x8xf32>
    %16 = vector.shape_cast %15 : vector<2x8xf32> to vector<2x8x1xf32>
    %c0_9 = arith.constant 0 : index
    %c0_10 = arith.constant 0 : index
    %17 = vector.load %arg3[%c0_9, %c0_10] : memref<8x4xf32, #tpu.memory_space<vmem>>, vector<8x4xf32>
    %18 = vector.shape_cast %17 : vector<8x4xf32> to vector<1x8x4xf32>
    %19 = vector.broadcast %16 : vector<2x8x1xf32> to vector<2x8x4xf32>
    %20 = vector.broadcast %18 : vector<1x8x4xf32> to vector<2x8x4xf32>
    %21 = arith.mulf %19, %20 : vector<2x8x4xf32>
    %cst_11 = arith.constant dense<0.000000e+00> : vector<2x4xf32>
    %22 = vector.multi_reduction <add>, %21, %cst_11 [1] : vector<2x8x4xf32> to vector<2x4xf32>
    %c0_12 = arith.constant 0 : index
    %c0_13 = arith.constant 0 : index
    %23 = vector.load %arg4[%c0_12, %c0_13] : memref<1x4xf32, #tpu.memory_space<vmem>>, vector<1x4xf32>
    %24 = vector.broadcast %23 : vector<1x4xf32> to vector<2x4xf32>
    %25 = arith.addf %22, %24 : vector<2x4xf32>
    %cst_14 = arith.constant 0.000000e+00 : f32
    %26 = vector.broadcast %cst_14 : f32 to vector<2x4xf32>
    %27 = arith.subf %26, %25 : vector<2x4xf32>
    %28 = math.exp %27 : vector<2x4xf32>
    %cst_15 = arith.constant 1.000000e+00 : f32
    %29 = vector.broadcast %cst_15 : f32 to vector<2x4xf32>
    %30 = arith.addf %29, %28 : vector<2x4xf32>
    %cst_16 = arith.constant 1.000000e+00 : f32
    %31 = vector.broadcast %cst_16 : f32 to vector<2x4xf32>
    %32 = arith.divf %31, %30 : vector<2x4xf32>
    %33 = vector.shape_cast %32 : vector<2x4xf32> to vector<2x4x1xf32>
    %34 = vector.broadcast %33 : vector<2x4x1xf32> to vector<2x4x256xf32>
    %35 = arith.mulf %0, %34 : vector<2x4x256xf32>
    %c0_17 = arith.constant 0 : index
    %c0_18 = arith.constant 0 : index
    %c0_19 = arith.constant 0 : index
    %36 = vector.load %arg6[%c0_17, %c0_18, %c0_19] : memref<2x4x256xf32, #tpu.memory_space<vmem>>, vector<2x4x256xf32>
    tpu.vector_store %arg6[%c0_17, %c0_18, %c0_19], %35 {strides = array<i32>} : memref<2x4x256xf32, #tpu.memory_space<vmem>>, vector<2x4x256xf32>,
    return
  }
  func.func @transform_0(%arg0: i32) -> (i32, i32) {
    %c0_i32 = arith.constant 0 : i32
    %c0_i32_0 = arith.constant 0 : i32
    %c0_i32_1 = arith.constant 0 : i32
    return %c0_i32, %c0_i32_0 : i32, i32
  }
  func.func @transform_1(%arg0: i32) -> (i32, i32) {
    %c0_i32 = arith.constant 0 : i32
    %c0_i32_0 = arith.constant 0 : i32
    %c0_i32_1 = arith.constant 0 : i32
    return %c0_i32, %c0_i32_0 : i32, i32
  }
  func.func @transform_2(%arg0: i32) -> (i32, i32) {
    %c0_i32 = arith.constant 0 : i32
    %c0_i32_0 = arith.constant 0 : i32
    %c0_i32_1 = arith.constant 0 : i32
    return %c0_i32, %c0_i32_0 : i32, i32
  }
  func.func @transform_3(%arg0: i32) -> (i32, i32) {
    %c0_i32 = arith.constant 0 : i32
    %c0_i32_0 = arith.constant 0 : i32
    %c0_i32_1 = arith.constant 0 : i32
    return %c0_i32, %c0_i32_0 : i32, i32
  }
  func.func @transform_4(%arg0: i32) -> (i32, i32, i32) {
    %c0_i32 = arith.constant 0 : i32
    %c0_i32_0 = arith.constant 0 : i32
    %c0_i32_1 = arith.constant 0 : i32
    return %arg0, %c0_i32, %c0_i32_0 : i32, i32, i32
  }
  func.func @transform_5(%arg0: i32) -> (i32, i32, i32) {
    %c0_i32 = arith.constant 0 : i32
    %c0_i32_0 = arith.constant 0 : i32
    %c0_i32_1 = arith.constant 0 : i32
    return %arg0, %c0_i32, %c0_i32_0 : i32, i32, i32
  }
}

</mosaic_0001>

<llo_original>
// kernel: se3d_forward.1
$region0: #{se3d_forward.1}
  #allocation0 [shape = 'u32[]', space=smem, size = 0x4, offset = 0x4, fixed_abs, tag = 'smem constant byte address 0x4 - core index']
  #allocation1 [shape = 'u32[144,128]{1,0:T(1,128)}', space=vmem, size = 0x12000, scoped, tag = 'internal scratch']
  %s0 = inlined_call_operand.vmem [shape: f32[4,8], index: 0, kind: input, shape index: {}]
  %s1 = inlined_call_operand.vmem [shape: f32[1,8], index: 1, kind: input, shape index: {}]
  %s2 = inlined_call_operand.vmem [shape: f32[8,4], index: 2, kind: input, shape index: {}]
  %s3 = inlined_call_operand.vmem [shape: f32[1,4], index: 3, kind: input, shape index: {}]
  %s4 = inlined_call_operand.vmem [shape: f32[2,4,256], index: 4, kind: input, shape index: {}]
  %s5 = inlined_call_operand.vmem [shape: f32[2,4,256], index: 5, kind: output, shape index: {}]
  %s6 = sld [smem:[#allocation0]]
  $region30: #{se3d_forward.1} parent=0
    _
  %s8 = ssub.s32 1, %s6
  %s9 = scalar_select 0, %s8, %s6
  // Predicated region
  $region2: #{se3d_forward.1} parent=0 // pred_check
    _
  $region3: #{se3d_forward.1} parent=0 // pred_check_branch
    %11 = sbr.rel (0) target = $region5
  $region4: #{se3d_forward.1} parent=0 // pred_region
    _
  $region5: #{se3d_forward.1} parent=0 // pred_fallthru
    _
  // Predicated region
  $region6: #{se3d_forward.1} parent=0 // pred_check
    _
  $region7: #{se3d_forward.1} parent=0 // pred_check_branch
    %13 = sbr.rel (0) target = $region9
  $region8: #{se3d_forward.1} parent=0 // pred_region
    _
  $region9: #{se3d_forward.1} parent=0 // pred_fallthru
    _
  // Predicated region
  $region10: #{se3d_forward.1} parent=0 // pred_check
    _
  $region11: #{se3d_forward.1} parent=0 // pred_check_branch
    %15 = sbr.rel (0) target = $region13
  $region12: #{se3d_forward.1} parent=0 // pred_region
    _
  $region13: #{se3d_forward.1} parent=0 // pred_fallthru
    _
  // Predicated region
  $region14: #{se3d_forward.1} parent=0 // pred_check
    _
  $region15: #{se3d_forward.1} parent=0 // pred_check_branch
    %17 = sbr.rel (0) target = $region17
  $region16: #{se3d_forward.1} parent=0 // pred_region
    _
  $region17: #{se3d_forward.1} parent=0 // pred_fallthru
    _
  // Predicated region
  $region18: #{se3d_forward.1} parent=0 // pred_check
    _
  $region19: #{se3d_forward.1} parent=0 // pred_check_branch
    %19 = sbr.rel (0) target = $region21
  $region20: #{se3d_forward.1} parent=0 // pred_region
    _
  $region21: #{se3d_forward.1} parent=0 // pred_fallthru
    _
  %v20 = vld [vmem:[%s4] sm:$0xff]
  %v21 = vld [vmem:[%s4 + $0x8] sm:$0xff]
  %v24 = vcombine.high %v20, %v20
  %v25 = vcombine.high %v21, %v21
  %vm28 = vcmask 1043456
  %v29 = vsel %vm28, %v20, 0.0
  %v30 = vsel %vm28, %v24, 0.0
  %v31 = vadd.f32 %v29, %v30
  %32 = vadd.xlane.f32.xlu0 %v31
  %v33 = vpop.xlane.xlu0 %32
  %v34 = vsel %vm28, %v21, 0.0
  %v35 = vsel %vm28, %v25, 0.0
  %v36 = vadd.f32 %v34, %v35
  %37 = vadd.xlane.f32.xlu0 %v36
  %v38 = vpop.xlane.xlu0 %37
  %v39 = vmul.f32 %v33, 0.00390625
  %v40 = vmul.f32 %v38, 0.00390625
  %v41 = vld [vmem:[%s0] sm:$0xf]
  %v42 = vmul.f32 %v39, %v41
  %v43 = vmul.f32 %v40, %v41
  %vm44 = vcmask 60416
  %v45 = vsel %vm44, %v42, 0.0
  %v46 = vrot.slane %v45, 4
  %v47 = vadd.f32 %v45, %v46
  %v48 = vrot.slane %v47, 2
  %v49 = vadd.f32 %v47, %v48
  %v50 = vrot.slane %v49, 1
  %v51 = vadd.f32 %v49, %v50
  %v52 = vsel %vm44, %v43, 0.0
  %v53 = vrot.slane %v52, 4
  %v54 = vadd.f32 %v52, %v53
  %v55 = vrot.slane %v54, 2
  %v56 = vadd.f32 %v54, %v55
  %v57 = vrot.slane %v56, 1
  %v58 = vadd.f32 %v56, %v57
  %v59 = vld [vmem:[%s1] sm:$0x1]
  %v61 = vlaneseq
  %v62 = vshrl.u32 %v61, 7
  %v63 = vsub.s32 0, %v62
  %v64 = vrot.slane %v59, %v63
  %v66 = vadd.f32 %v51, %v64
  %v67 = vadd.f32 %v58, %v64
  %v68 = vmax.f32 %v66, 0.0
  %v69 = vmax.f32 %v67, 0.0
  %v70 = vlaneseq
  %v71 = vshrl.u32 %v70, 7
  %v72 = vsub.s32 0, %v71
  %v73 = vrot.slane %v68, %v72
  %75 = vbcast.lane.b32.xlu0 %v73, 256
  %v76 = vpop.permute.xlu0 %75
  %v77 = vlaneseq
  %v78 = vshrl.u32 %v77, 7
  %v79 = vsub.s32 0, %v78
  %v80 = vrot.slane %v69, %v79
  %82 = vbcast.lane.b32.xlu0 %v80, 256
  %v83 = vpop.permute.xlu0 %82
  %v84 = vld [vmem:[%s2] sm:$0xff]
  %v85 = vmul.f32 %v76, %v84
  %v86 = vmul.f32 %v83, %v84
  %vm87 = vcmask 31744
  %v88 = vsel %vm87, %v85, 0.0
  %v89 = vrot.slane %v88, 4
  %v90 = vadd.f32 %v88, %v89
  %v91 = vrot.slane %v90, 2
  %v92 = vadd.f32 %v90, %v91
  %v93 = vrot.slane %v92, 1
  %v94 = vadd.f32 %v92, %v93
  %v95 = vsel %vm87, %v86, 0.0
  %v96 = vrot.slane %v95, 4
  %v97 = vadd.f32 %v95, %v96
  %v98 = vrot.slane %v97, 2
  %v99 = vadd.f32 %v97, %v98
  %v100 = vrot.slane %v99, 1
  %v101 = vadd.f32 %v99, %v100
  %v102 = vld [vmem:[%s3] sm:$0x1]
  %v104 = vlaneseq
  %v105 = vshrl.u32 %v104, 7
  %v106 = vsub.s32 0, %v105
  %v107 = vrot.slane %v102, %v106
  %v109 = vadd.f32 %v94, %v107
  %v110 = vadd.f32 %v101, %v107
  %v111 = vsub.f32 0.0, %v109
  %v112 = vsub.f32 0.0, %v110
  %v113 = vmul.f32 %v111, 1.442695
  %v114 = vpow.pop %v113
  %v115 = vmul.f32 %v112, 1.442695
  %v116 = vpow.pop %v115
  %v117 = vadd.f32 %v114, 1.0
  %v118 = vadd.f32 %v116, 1.0
  %v119 = vrcp.pop %v117
  %v120 = vmul.f32 1.0, %v119
  %v121 = vrcp.pop %v118
  %v122 = vmul.f32 1.0, %v121
  %v123 = vlaneseq
  %v124 = vshrl.u32 %v123, 7
  %v125 = vsub.s32 0, %v124
  %v126 = vrot.slane %v120, %v125
  %128 = vbcast.lane.b32.xlu0 %v126, 256
  %v129 = vpop.permute.xlu0 %128
  %v130 = vlaneseq
  %v131 = vshrl.u32 %v130, 7
  %v132 = vsub.s32 0, %v131
  %v133 = vrot.slane %v122, %v132
  %135 = vbcast.lane.b32.xlu0 %v133, 256
  %v136 = vpop.permute.xlu0 %135
  %v140 = vunpack.c.l.s4 839922192
  %v141 = vunpack.c.0.s8 %v140
  %v142 = vlaneseq
  %v143 = vshrl.u32 %v142, 7
  %v144 = vsub.s32 %v141, %v143
  %v145 = vrot.slane %v129, %v144
  %v147 = vunpack.c.l.s4 839922192
  %v148 = vunpack.c.0.s8 %v147
  %v149 = vlaneseq
  %v150 = vshrl.u32 %v149, 7
  %v151 = vsub.s32 %v148, %v150
  %v152 = vrot.slane %v136, %v151
  %v155 = vmul.f32 %v20, %v145
  %v156 = vmul.f32 %v21, %v152
  %157 = vst [vmem:[%s5] sm:$0xff] %v155
  %158 = vst [vmem:[%s5 + $0x8] sm:$0xff] %v156
  // Predicated region
  $region22: #{se3d_forward.1} parent=0 // pred_check
    _
  $region23: #{se3d_forward.1} parent=0 // pred_check_branch
    %160 = sbr.rel (0) target = $region25
  $region24: #{se3d_forward.1} parent=0 // pred_region
    _
  $region25: #{se3d_forward.1} parent=0 // pred_fallthru
    _
  // Predicated region
  $region26: #{se3d_forward.1} parent=0 // pred_check
    _
  $region27: #{se3d_forward.1} parent=0 // pred_check_branch
    %162 = sbr.rel (0) target = $region29
  $region28: #{se3d_forward.1} parent=0 // pred_region
    _
  $region29: #{se3d_forward.1} parent=0 // pred_fallthru
    _

</llo_original>
